<compile_context>
chip_gen: v7x
topology: tpu7x:2x2x1
jax: 0.10.0
libtpu: 0.0.40
codegen_flags: <defaults>
</compile_context>

<pallas_src>
import functools

import jax
import jax.numpy as jnp
from jax.experimental import pallas as pl
from jax.experimental.pallas import tpu as pltpu


def _transition_kernel(x_ref, scale_ref, shift_ref, w_ref, o_ref):
    # x_ref:     (4, TM, Cin)  -- the 4 pixels of each 2x2 pooling window
    # scale_ref: (1, Cin) f32  -- 0.25 * gamma / sqrt(var + eps)
    # shift_ref: (1, Cin) f32  -- 0.25 * (beta - mean * gamma / sqrt(var + eps))
    # w_ref:     (Cin, Cout)   -- 1x1 conv weight, transposed
    # o_ref:     (TM, Cout) f32
    scale = scale_ref[...]
    shift = shift_ref[...]

    def bn_relu(pix):                      # BN(+1/4) + ReLU, computed in f32
        return jnp.maximum(pix.astype(jnp.float32) * scale + shift, 0.0)

    # Running sum over the 4 pool pixels (one accumulator + one slab live).
    xp = bn_relu(x_ref[0])
    xp = xp + bn_relu(x_ref[1])
    xp = xp + bn_relu(x_ref[2])
    xp = xp + bn_relu(x_ref[3])

    # 1x1 conv as a single channel matmul; operands in the (possibly bf16)
    # storage dtype, f32 accumulation on the MXU.
    o_ref[...] = jnp.dot(
        xp.astype(w_ref.dtype), w_ref[...],
        preferred_element_type=jnp.float32,
    ).astype(o_ref.dtype)


def _round_up(v, k):
    return ((v + k - 1) // k) * k


def _auto_vmem_limit_bytes():
    """Derive a VMEM limit from the chip's actual capacity (with headroom)."""
    cap = 64 * 1024 * 1024
    try:
        cap = int(pltpu.get_tpu_info().vmem_capacity_bytes)
    except Exception:
        pass
    # ~80% of physical, capped at ~104 MiB (v5e/v6e), floor of 32 MiB (v7x).
    return max(32 * 1024 * 1024, min(int(cap * 0.8), 104 * 1024 * 1024))


@functools.partial(
    jax.jit,
    static_argnames=("tm", "use_bf16", "channels_last_out", "vmem_limit_mib"))
def transition_layer(x_nchw, gamma, beta, running_mean, running_var, conv_w,
                     eps=1e-5, *, tm=1024, use_bf16=True,
                     channels_last_out=False, vmem_limit_mib=None):
    """x_nchw: (N, Cin, H, W).  conv_w: (Cout, Cin) or (Cout, Cin, 1, 1)."""
    n, cin, h, w = x_nchw.shape
    cout = conv_w.shape[0]
    hh, wh = h // 2, w // 2            # AvgPool2d(2,2) floors odd spatial dims
    m = n * hh * wh
    compute_dtype = jnp.bfloat16 if use_bf16 else jnp.float32
    itemsize = 2 if use_bf16 else 4

    # Fold BN into a per-channel affine, with the 1/4 avg-pool factor folded in
    # (ReLU is positively homogeneous: 0.25*ReLU(x*s+b) == ReLU(x*(s/4)+(b/4))).
    scale = gamma / jnp.sqrt(running_var + eps)
    shift = beta - running_mean * scale
    scale2 = (scale * 0.25).reshape(1, cin).astype(jnp.float32)
    shift2 = (shift * 0.25).reshape(1, cin).astype(jnp.float32)

    # NCHW -> (4, M, Cin) pool-grouped layout in ONE XLA copy.  The (optional)
    # bf16 cast fuses into the transpose, so that copy's write and the kernel's
    # HBM read are both half width.  Channels land on the lane axis and pool
    # pixels on the leading axis, so the kernel does zero cross-lane shuffles.
    xg = x_nchw[:, :, :hh * 2, :wh * 2].astype(compute_dtype)
    xg = xg.reshape(n, cin, hh, 2, wh, 2)
    xg = jnp.transpose(xg, (3, 5, 0, 2, 4, 1)).reshape(4, m, cin)

    w_t = conv_w.reshape(cout, cin).T.astype(compute_dtype)        # (Cin, Cout)

    # --- Tile sizing against an explicit VMEM budget -------------------------
    if vmem_limit_mib is None:
        vmem_limit = _auto_vmem_limit_bytes()
    else:
        vmem_limit = int(vmem_limit_mib) * 1024 * 1024
    budget = vmem_limit - 4 * 1024 * 1024      # headroom for Mosaic scratch

    def tile_bytes(t):                         # conservative: everything x2
        return (2 * 4 * t * cin * itemsize     # input block  (4, t, Cin)
                + 2 * t * cout * 4             # output block (t, Cout) f32
                + 2 * cin * cout * itemsize    # weight
                + 4 * cin * 4)                 # scale + shift

    tm_fit = min(_round_up(tm, 8), _round_up(m, 8))
    while tm_fit > 8 and tile_bytes(tm_fit) > budget:
        tm_fit = _round_up(tm_fit // 2, 8)

    # Guarantee >= 2 grid blocks whenever M allows, so the "parallel" M axis
    # can shard across both TensorCores on v7x (megacore).
    half = _round_up(pl.cdiv(m, 2), 8)
    tm_eff = min(tm_fit, half) if half < m else m
    tm_eff = min(tm_eff, m)
    grid = (pl.cdiv(m, tm_eff),)

    cost = pl.CostEstimate(
        flops=2 * m * cin * cout,
        transcendentals=0,
        bytes_accessed=(4 * m * cin * itemsize + m * cout * 4
                        + cin * cout * itemsize + 2 * cin * 4),
    )

    out_flat = pl.pallas_call(
        _transition_kernel,
        out_shape=jax.ShapeDtypeStruct((m, cout), jnp.float32),
        grid_spec=pltpu.PrefetchScalarGridSpec(
            num_scalar_prefetch=0,
            grid=grid,
            in_specs=[
                pl.BlockSpec((4, tm_eff, cin), lambda i: (0, i, 0)),
                pl.BlockSpec((1, cin), lambda i: (0, 0)),
                pl.BlockSpec((1, cin), lambda i: (0, 0)),
                pl.BlockSpec((cin, cout), lambda i: (0, 0)),
            ],
            out_specs=pl.BlockSpec((tm_eff, cout), lambda i: (i, 0)),
        ),
        compiler_params=pltpu.CompilerParams(
            dimension_semantics=("parallel",),     # megacore-shard the M axis
            vmem_limit_bytes=vmem_limit,
        ),
        cost_estimate=cost,
    )(xg, scale2, shift2, w_t)

    out = out_flat.reshape(n, hh, wh, cout)        # NHWC
    if channels_last_out:
        return out
    return jnp.transpose(out, (0, 3, 1, 2))        # NCHW (PyTorch contract)


def _reference(x, gamma, beta, mean, var, conv_w, eps=1e-5):
    """Pure-JAX reference mirroring the PyTorch forward (eval-mode BN)."""
    b = (x - mean[None, :, None, None]) / jnp.sqrt(var[None, :, None, None] + eps)
    b = b * gamma[None, :, None, None] + beta[None, :, None, None]
    r = jnp.maximum(b, 0.0)
    y = jnp.einsum("nchw,oc->nohw", r, conv_w.reshape(conv_w.shape[0], -1))
    n, o, hh, ww = y.shape
    y = y[:, :, :hh // 2 * 2, :ww // 2 * 2]
    return y.reshape(n, o, hh // 2, 2, ww // 2, 2).mean(axis=(3, 5))


if __name__ == "__main__":
    key = jax.random.PRNGKey(0)
    N, Cin, Cout, H, W = 2, 16, 8, 16, 16

    ks = jax.random.split(key, 6)
    x = jax.random.normal(ks[0], (N, Cin, H, W), dtype=jnp.float32)
    gamma = jax.random.normal(ks[1], (Cin,), dtype=jnp.float32) * 0.1 + 1.0
    beta = jax.random.normal(ks[2], (Cin,), dtype=jnp.float32) * 0.1
    running_mean = jax.random.normal(ks[3], (Cin,), dtype=jnp.float32) * 0.1
    running_var = jnp.abs(jax.random.normal(ks[4], (Cin,), dtype=jnp.float32)) + 0.5
    conv_w = jax.random.normal(ks[5], (Cout, Cin), dtype=jnp.float32) * 0.1

    ref = _reference(x, gamma, beta, running_mean, running_var, conv_w)

    # Exact (f32) path: tight parity with the PyTorch eval-mode forward.
    out_f32 = transition_layer(x, gamma, beta, running_mean, running_var,
                               conv_w, use_bf16=False)
    out_f32 = jax.block_until_ready(out_f32)
    assert out_f32.shape == (N, Cout, H // 2, W // 2), out_f32.shape
    assert jnp.allclose(out_f32, ref, atol=1e-4, rtol=1e-4), (
        float(jnp.max(jnp.abs(out_f32 - ref))))

    # Default fast path: bf16 storage / MXU operands, f32 accumulation.
    out_bf16 = transition_layer(x, gamma, beta, running_mean, running_var,
                                conv_w)
    out_bf16 = jax.block_until_ready(out_bf16)
    assert out_bf16.shape == (N, Cout, H // 2, W // 2), out_bf16.shape
    assert jnp.allclose(out_bf16, ref, atol=3e-2, rtol=3e-2), (
        float(jnp.max(jnp.abs(out_bf16 - ref))))

    print("KERNEL_OK")
</pallas_src>

<mosaic_0001>
module attributes {stable_mosaic.version = 11 : i64} {
  func.func @_transition_kernel(%arg0: i32, %arg1: memref<4x64x16xf32, #tpu.memory_space<vmem>>, %arg2: memref<1x16xf32, #tpu.memory_space<vmem>>, %arg3: memref<1x16xf32, #tpu.memory_space<vmem>>, %arg4: memref<16x8xf32, #tpu.memory_space<vmem>>, %arg5: memref<64x8xf32, #tpu.memory_space<vmem>>) attributes {dimension_semantics = [#tpu.dimension_semantics<parallel>], iteration_bounds = array<i64: 2>, scalar_prefetch = 0 : i64, scratch_operands = 0 : i64, tpu.core_type = #tpu.core_type<tc>, window_params = [{transform_indices = @transform_0, window_bounds = array<i64: 4, 64, 16>}, {pipeline_mode = #tpu.pipeline_mode<synchronous>, transform_indices = @transform_1, window_bounds = array<i64: 1, 16>}, {pipeline_mode = #tpu.pipeline_mode<synchronous>, transform_indices = @transform_2, window_bounds = array<i64: 1, 16>}, {pipeline_mode = #tpu.pipeline_mode<synchronous>, transform_indices = @transform_3, window_bounds = array<i64: 16, 8>}, {transform_indices = @transform_4, window_bounds = array<i64: 64, 8>}]} {
    %c0 = arith.constant 0 : index
    %c0_0 = arith.constant 0 : index
    %0 = vector.load %arg2[%c0, %c0_0] : memref<1x16xf32, #tpu.memory_space<vmem>>, vector<1x16xf32>
    %c0_1 = arith.constant 0 : index
    %c0_2 = arith.constant 0 : index
    %1 = vector.load %arg3[%c0_1, %c0_2] : memref<1x16xf32, #tpu.memory_space<vmem>>, vector<1x16xf32>
    %c0_3 = arith.constant 0 : index
    %c0_4 = arith.constant 0 : index
    %c0_5 = arith.constant 0 : index
    %2 = vector.load %arg1[%c0_3, %c0_4, %c0_5] : memref<4x64x16xf32, #tpu.memory_space<vmem>>, vector<1x64x16xf32>
    %3 = vector.shape_cast %2 : vector<1x64x16xf32> to vector<64x16xf32>
    %4 = vector.broadcast %0 : vector<1x16xf32> to vector<64x16xf32>
    %5 = arith.mulf %3, %4 : vector<64x16xf32>
    %6 = vector.broadcast %1 : vector<1x16xf32> to vector<64x16xf32>
    %7 = arith.addf %5, %6 : vector<64x16xf32>
    %cst = arith.constant 0.000000e+00 : f32
    %8 = vector.broadcast %cst : f32 to vector<64x16xf32>
    %9 = arith.maximumf %7, %8 : vector<64x16xf32>
    %c1 = arith.constant 1 : index
    %c0_6 = arith.constant 0 : index
    %c0_7 = arith.constant 0 : index
    %10 = vector.load %arg1[%c1, %c0_6, %c0_7] : memref<4x64x16xf32, #tpu.memory_space<vmem>>, vector<1x64x16xf32>
    %11 = vector.shape_cast %10 : vector<1x64x16xf32> to vector<64x16xf32>
    %12 = vector.broadcast %0 : vector<1x16xf32> to vector<64x16xf32>
    %13 = arith.mulf %11, %12 : vector<64x16xf32>
    %14 = vector.broadcast %1 : vector<1x16xf32> to vector<64x16xf32>
    %15 = arith.addf %13, %14 : vector<64x16xf32>
    %cst_8 = arith.constant 0.000000e+00 : f32
    %16 = vector.broadcast %cst_8 : f32 to vector<64x16xf32>
    %17 = arith.maximumf %15, %16 : vector<64x16xf32>
    %18 = arith.addf %9, %17 : vector<64x16xf32>
    %c2 = arith.constant 2 : index
    %c0_9 = arith.constant 0 : index
    %c0_10 = arith.constant 0 : index
    %19 = vector.load %arg1[%c2, %c0_9, %c0_10] : memref<4x64x16xf32, #tpu.memory_space<vmem>>, vector<1x64x16xf32>
    %20 = vector.shape_cast %19 : vector<1x64x16xf32> to vector<64x16xf32>
    %21 = vector.broadcast %0 : vector<1x16xf32> to vector<64x16xf32>
    %22 = arith.mulf %20, %21 : vector<64x16xf32>
    %23 = vector.broadcast %1 : vector<1x16xf32> to vector<64x16xf32>
    %24 = arith.addf %22, %23 : vector<64x16xf32>
    %cst_11 = arith.constant 0.000000e+00 : f32
    %25 = vector.broadcast %cst_11 : f32 to vector<64x16xf32>
    %26 = arith.maximumf %24, %25 : vector<64x16xf32>
    %27 = arith.addf %18, %26 : vector<64x16xf32>
    %c3 = arith.constant 3 : index
    %c0_12 = arith.constant 0 : index
    %c0_13 = arith.constant 0 : index
    %28 = vector.load %arg1[%c3, %c0_12, %c0_13] : memref<4x64x16xf32, #tpu.memory_space<vmem>>, vector<1x64x16xf32>
    %29 = vector.shape_cast %28 : vector<1x64x16xf32> to vector<64x16xf32>
    %30 = vector.broadcast %0 : vector<1x16xf32> to vector<64x16xf32>
    %31 = arith.mulf %29, %30 : vector<64x16xf32>
    %32 = vector.broadcast %1 : vector<1x16xf32> to vector<64x16xf32>
    %33 = arith.addf %31, %32 : vector<64x16xf32>
    %cst_14 = arith.constant 0.000000e+00 : f32
    %34 = vector.broadcast %cst_14 : f32 to vector<64x16xf32>
    %35 = arith.maximumf %33, %34 : vector<64x16xf32>
    %36 = arith.addf %27, %35 : vector<64x16xf32>
    %c0_15 = arith.constant 0 : index
    %c0_16 = arith.constant 0 : index
    %37 = vector.load %arg4[%c0_15, %c0_16] : memref<16x8xf32, #tpu.memory_space<vmem>>, vector<16x8xf32>
    %cst_17 = arith.constant dense<0.000000e+00> : vector<64x8xf32>
    %38 = tpu.matmul %36, %37, %cst_17 {dimension_numbers = #tpu.dot_dimension_numbers<[1], [0], [0], [1], [0, 0, 1, 1], [], []>} : vector<64x16xf32>, vector<16x8xf32>, vector<64x8xf32> -> vector<64x8xf32>
    %c0_18 = arith.constant 0 : index
    %c0_19 = arith.constant 0 : index
    %39 = vector.load %arg5[%c0_18, %c0_19] : memref<64x8xf32, #tpu.memory_space<vmem>>, vector<64x8xf32>
    tpu.vector_store %arg5[%c0_18, %c0_19], %38 {strides = array<i32>} : memref<64x8xf32, #tpu.memory_space<vmem>>, vector<64x8xf32>,
    return
  }
  func.func @transform_0(%arg0: i32) -> (i32, i32, i32) {
    %c0_i32 = arith.constant 0 : i32
    %c0_i32_0 = arith.constant 0 : i32
    %c0_i32_1 = arith.constant 0 : i32
    return %c0_i32, %arg0, %c0_i32_0 : i32, i32, i32
  }
  func.func @transform_1(%arg0: i32) -> (i32, i32) {
    %c0_i32 = arith.constant 0 : i32
    %c0_i32_0 = arith.constant 0 : i32
    %c0_i32_1 = arith.constant 0 : i32
    return %c0_i32, %c0_i32_0 : i32, i32
  }
  func.func @transform_2(%arg0: i32) -> (i32, i32) {
    %c0_i32 = arith.constant 0 : i32
    %c0_i32_0 = arith.constant 0 : i32
    %c0_i32_1 = arith.constant 0 : i32
    return %c0_i32, %c0_i32_0 : i32, i32
  }
  func.func @transform_3(%arg0: i32) -> (i32, i32) {
    %c0_i32 = arith.constant 0 : i32
    %c0_i32_0 = arith.constant 0 : i32
    %c0_i32_1 = arith.constant 0 : i32
    return %c0_i32, %c0_i32_0 : i32, i32
  }
  func.func @transform_4(%arg0: i32) -> (i32, i32) {
    %c0_i32 = arith.constant 0 : i32
    %c0_i32_0 = arith.constant 0 : i32
    return %arg0, %c0_i32 : i32, i32
  }
}

</mosaic_0001>

<llo_original>
// kernel: transition_layer.1
$region0: #{transition_layer.1}
  #allocation0 [shape = 'u32[]', space=smem, size = 0x4, offset = 0x4, fixed_abs, tag = 'smem constant byte address 0x4 - core index']
  #allocation1 [shape = 'u32[144,128]{1,0:T(1,128)}', space=vmem, size = 0x12000, scoped, tag = 'internal scratch']
  %s0 = inlined_call_operand.vmem [shape: f32[4,128,16], index: 0, kind: input, shape index: {}]
  %s1 = inlined_call_operand.vmem [shape: f32[1,16], index: 1, kind: input, shape index: {}]
  %s2 = inlined_call_operand.vmem [shape: f32[1,16], index: 2, kind: input, shape index: {}]
  %s3 = inlined_call_operand.vmem [shape: f32[16,8], index: 3, kind: input, shape index: {}]
  %s4 = inlined_call_operand.vmem [shape: f32[128,8], index: 4, kind: output, shape index: {}]
  %s5 = sld [smem:[#allocation0]]
  $region87: #{transition_layer.1} parent=0
    _
  %s7 = ssub.s32 1, %s5
  %s8 = scalar_select 0, %s7, %s5
  $region1: #{transition_layer.1} parent=0
    #allocation2 [shape = 'u8[262144]{0}', space=vmem, size = 0x40000, scoped, tag = 'input window, operand 0']
    loop: start=0, step=1, limit=4
    $region2: #{transition_layer.1} parent=1 // loop_pre_header
      _
    $region3: #{transition_layer.1} parent=1 // loop_header
      %s10 = sphi 0, %s14
      %p11 = scmp.ge.s32.totalorder %s10, 4
      %s20 = sphi 0, %s22
      %s23 = sphi 0, %s20
      %s24 = sphi 0, %s23
      %s40 = sphi 0, %s24
      %s44 = sphi 0, %s44
      %s46 = sphi 0, %s44
      %s47 = sphi 0, %s46
      %s61 = sphi 0, %s47
      %s65 = sphi 0, %s65
      %s67 = sphi 0, %s65
      %s68 = sphi 0, %s67
      %s82 = sphi 0, %s68
      %s86 = sphi 0, %s86
      %s88 = sphi 0, %s86
      %s89 = sphi 0, %s88
      %s103 = sphi 0, %s89
      %s109 = sphi 0, %s111
      %s112 = sphi 0, %s109
      %s113 = sphi 0, %s112
      %s129 = sphi 0, %s113
    $region4: #{transition_layer.1} parent=1 // loop_header_branch
      %13 = sbr.rel (%p11) target = $region8
    $region5: #{transition_layer.1} parent=1 // loop_body
      %s15 = ssub.s32 %s10, 1
      %s16 = ssub.s32 %s10, 2
      %s17 = sadd.s32 %s10, 1
      %s18 = ssub.s32 %s10, %s17
      %p19 = scmp.eq.s32.totalorder %s18, 0
      %s21 = sadd.s32 %s20, 1
      %s22 = scalar_select %p19, %s20, %s21
      %p25 = pneg %p19
      %p26 = scmp.eq.s32.totalorder %s10, 1
      %p27 = por %p25, %p26
      %p28 = scmp.ne.s32.totalorder %s20, %s23
      %p29 = scmp.eq.s32.totalorder %s10, 0
      %p30 = por %p28, %p29
      %p31 = scmp.ne.s32.totalorder %s20, %s23
      %p32 = scmp.eq.s32.totalorder %s15, 1
      %p33 = por %p31, %p32
      %p34 = scmp.ne.s32.totalorder %s23, %s24
      %p35 = scmp.eq.s32.totalorder %s15, 0
      %p36 = por %p34, %p35
      %p37 = scmp.ne.s32.totalorder %s23, %s24
      %p38 = scmp.eq.s32.totalorder %s16, 1
      %p39 = por %p37, %p38
      %p41 = scmp.ne.s32.totalorder %s24, %s40
      %p42 = scmp.eq.s32.totalorder %s16, 0
      %p43 = por %p41, %p42
      %s45 = sadd.s32 %s44, 1
      %p48 = scmp.eq.s32.totalorder %s10, 1
      %p49 = scmp.ne.s32.totalorder %s44, %s46
      %p50 = scmp.eq.s32.totalorder %s10, 0
      %p51 = por %p49, %p50
      %p52 = scmp.ne.s32.totalorder %s44, %s46
      %p53 = scmp.eq.s32.totalorder %s15, 1
      %p54 = por %p52, %p53
      %p55 = scmp.ne.s32.totalorder %s46, %s47
      %p56 = scmp.eq.s32.totalorder %s15, 0
      %p57 = por %p55, %p56
      %p58 = scmp.ne.s32.totalorder %s46, %s47
      %p59 = scmp.eq.s32.totalorder %s16, 1
      %p60 = por %p58, %p59
      %p62 = scmp.ne.s32.totalorder %s47, %s61
      %p63 = scmp.eq.s32.totalorder %s16, 0
      %p64 = por %p62, %p63
      %s66 = sadd.s32 %s65, 1
      %p69 = scmp.eq.s32.totalorder %s10, 1
      %p70 = scmp.ne.s32.totalorder %s65, %s67
      %p71 = scmp.eq.s32.totalorder %s10, 0
      %p72 = por %p70, %p71
      %p73 = scmp.ne.s32.totalorder %s65, %s67
      %p74 = scmp.eq.s32.totalorder %s15, 1
      %p75 = por %p73, %p74
      %p76 = scmp.ne.s32.totalorder %s67, %s68
      %p77 = scmp.eq.s32.totalorder %s15, 0
      %p78 = por %p76, %p77
      %p79 = scmp.ne.s32.totalorder %s67, %s68
      %p80 = scmp.eq.s32.totalorder %s16, 1
      %p81 = por %p79, %p80
      %p83 = scmp.ne.s32.totalorder %s68, %s82
      %p84 = scmp.eq.s32.totalorder %s16, 0
      %p85 = por %p83, %p84
      %s87 = sadd.s32 %s86, 1
      %p90 = scmp.eq.s32.totalorder %s10, 1
      %p91 = scmp.ne.s32.totalorder %s86, %s88
      %p92 = scmp.eq.s32.totalorder %s10, 0
      %p93 = por %p91, %p92
      %p94 = scmp.ne.s32.totalorder %s86, %s88
      %p95 = scmp.eq.s32.totalorder %s15, 1
      %p96 = por %p94, %p95
      %p97 = scmp.ne.s32.totalorder %s88, %s89
      %p98 = scmp.eq.s32.totalorder %s15, 0
      %p99 = por %p97, %p98
      %p100 = scmp.ne.s32.totalorder %s88, %s89
      %p101 = scmp.eq.s32.totalorder %s16, 1
      %p102 = por %p100, %p101
      %p104 = scmp.ne.s32.totalorder %s89, %s103
      %p105 = scmp.eq.s32.totalorder %s16, 0
      %p106 = por %p104, %p105
      %s107 = ssub.s32 %s10, %s17
      %p108 = scmp.eq.s32.totalorder %s107, 0
      %s110 = sadd.s32 %s109, 1
      %s111 = scalar_select %p108, %s109, %s110
      %p114 = pneg %p108
      %p115 = scmp.eq.s32.totalorder %s10, 1
      %p116 = por %p114, %p115
      %p117 = scmp.ne.s32.totalorder %s109, %s112
      %p118 = scmp.eq.s32.totalorder %s10, 0
      %p119 = por %p117, %p118
      %p120 = scmp.ne.s32.totalorder %s109, %s112
      %p121 = scmp.eq.s32.totalorder %s15, 1
      %p122 = por %p120, %p121
      %p123 = scmp.ne.s32.totalorder %s112, %s113
      %p124 = scmp.eq.s32.totalorder %s15, 0
      %p125 = por %p123, %p124
      %p126 = scmp.ne.s32.totalorder %s112, %s113
      %p127 = scmp.eq.s32.totalorder %s16, 1
      %p128 = por %p126, %p127
      %p130 = scmp.ne.s32.totalorder %s113, %s129
      %p131 = scmp.eq.s32.totalorder %s16, 0
      %p132 = por %p130, %p131
      %p133 = scmp.le.s32.totalorder 1, %s10
      %p134 = scmp.lt.s32.totalorder %s10, 3
      %p135 = pnand %p133, %p134
      %p136 = pneg %p135
      // Predicated region
      $region9: #{transition_layer.1} parent=5 // pred_check
        _
      $region10: #{transition_layer.1} parent=5 // pred_check_branch
        %138 = sbr.rel (%p135) target = $region12
      $region11: #{transition_layer.1} parent=5 // pred_region
        %s139 = ssub.s32 %s10, 1
        // Predicated region
        $region13: #{transition_layer.1} parent=11 // pred_check
          %p140 = pneg %p57
        $region14: #{transition_layer.1} parent=11 // pred_check_branch
          %142 = sbr.rel (%p140) target = $region16
        $region15: #{transition_layer.1} parent=11 // pred_region
          _
        $region16: #{transition_layer.1} parent=11 // pred_fallthru
          _
        // Predicated region
        $region17: #{transition_layer.1} parent=11 // pred_check
          %p143 = pneg %p78
        $region18: #{transition_layer.1} parent=11 // pred_check_branch
          %145 = sbr.rel (%p143) target = $region20
        $region19: #{transition_layer.1} parent=11 // pred_region
          _
        $region20: #{transition_layer.1} parent=11 // pred_fallthru
          _
        // Predicated region
        $region21: #{transition_layer.1} parent=11 // pred_check
          %p146 = pneg %p99
        $region22: #{transition_layer.1} parent=11 // pred_check_branch
          %148 = sbr.rel (%p146) target = $region24
        $region23: #{transition_layer.1} parent=11 // pred_region
          _
        $region24: #{transition_layer.1} parent=11 // pred_fallthru
          _
      $region12: #{transition_layer.1} parent=5 // pred_fallthru
        _
      %p149 = scmp.lt.s32.totalorder %s10, 2
      // Predicated region
      $region25: #{transition_layer.1} parent=5 // pred_check
        %p150 = pneg %p149
      $region26: #{transition_layer.1} parent=5 // pred_check_branch
        %152 = sbr.rel (%p150) target = $region28
      $region27: #{transition_layer.1} parent=5 // pred_region
        // Predicated region
        $region29: #{transition_layer.1} parent=27 // pred_check
          %p153 = pneg %p30
        $region30: #{transition_layer.1} parent=27 // pred_check_branch
          %155 = sbr.rel (%p153) target = $region32
        $region31: #{transition_layer.1} parent=27 // pred_region
          %s156 = sand.u32 %s20, 1
          %s157 = sand.u32 %s20, 1
          %s158 = smul.addr %s157, 256
          %s159 = scalar_lea.vmem [#allocation2], %s158
          %s160 = smul.u32 8, %s10
          %s161 = smul.addr %s160, 8
          %s162 = scalar_lea.vmem %s0, %s161
          // Predicated region
          $region33: #{transition_layer.1} parent=31 // pred_check
            _
          $region34: #{transition_layer.1} parent=31 // pred_check_branch
            %164 = sbr.rel (0) target = $region36
          $region35: #{transition_layer.1} parent=31 // pred_region
            // Predicated region
            $region37: #{transition_layer.1} parent=35 // pred_check
              _
            $region38: #{transition_layer.1} parent=35 // pred_check_branch
              %166 = sbr.rel (0) target = $region40
            $region39: #{transition_layer.1} parent=35 // pred_region
              // Predicated region
              $region52: #{transition_layer.1} parent=39 // pred_check
                _
              $region53: #{transition_layer.1} parent=39 // pred_check_branch
                %243 = sbr.rel (0) target = $region55
              $region54: #{transition_layer.1} parent=39 // pred_region
                loop: start=0, step=1, limit=1
                $region56: #{transition_layer.1} parent=54 // loop_pre_header
                  _
                $region57: #{transition_layer.1} parent=54 // loop_header
                  %s245 = sphi 0, %s249
                  %p246 = scmp.ge.s32.totalorder %s245, 1
                  %s250 = sphi %s162, %s162
                  %s251 = sphi %s159, %s159
                $region58: #{transition_layer.1} parent=54 // loop_header_branch
                  %248 = sbr.rel (%p246) target = $region62
                $region59: #{transition_layer.1} parent=54 // loop_body
                  %v252 = vld [vmem:[%s250] sm:$0xff]
                  %253 = vst [vmem:[%s251] sm:$0xff] %v252
                  %v254 = vld [vmem:[%s250 + $0x8] sm:$0xff]
                  %255 = vst [vmem:[%s251 + $0x8] sm:$0xff] %v254
                  %v256 = vld [vmem:[%s250 + $0x10] sm:$0xff]
                  %257 = vst [vmem:[%s251 + $0x10] sm:$0xff] %v256
                  %v258 = vld [vmem:[%s250 + $0x18] sm:$0xff]
                  %259 = vst [vmem:[%s251 + $0x18] sm:$0xff] %v258
                  %v260 = vld [vmem:[%s250 + $0x20] sm:$0xff]
                  %261 = vst [vmem:[%s251 + $0x20] sm:$0xff] %v260
                  %v262 = vld [vmem:[%s250 + $0x28] sm:$0xff]
                  %263 = vst [vmem:[%s251 + $0x28] sm:$0xff] %v262
                  %v264 = vld [vmem:[%s250 + $0x30] sm:$0xff]
                  %265 = vst [vmem:[%s251 + $0x30] sm:$0xff] %v264
                  %v266 = vld [vmem:[%s250 + $0x38] sm:$0xff]
                  %267 = vst [vmem:[%s251 + $0x38] sm:$0xff] %v266
                  %v268 = vld [vmem:[%s250 + $0x80] sm:$0xff]
                  %269 = vst [vmem:[%s251 + $0x40] sm:$0xff] %v268
                  %v270 = vld [vmem:[%s250 + $0x88] sm:$0xff]
                  %271 = vst [vmem:[%s251 + $0x48] sm:$0xff] %v270
                  %v272 = vld [vmem:[%s250 + $0x90] sm:$0xff]
                  %273 = vst [vmem:[%s251 + $0x50] sm:$0xff] %v272
                  %v274 = vld [vmem:[%s250 + $0x98] sm:$0xff]
                  %275 = vst [vmem:[%s251 + $0x58] sm:$0xff] %v274
                  %v276 = vld [vmem:[%s250 + $0xa0] sm:$0xff]
                  %277 = vst [vmem:[%s251 + $0x60] sm:$0xff] %v276
                  %v278 = vld [vmem:[%s250 + $0xa8] sm:$0xff]
                  %279 = vst [vmem:[%s251 + $0x68] sm:$0xff] %v278
                  %v280 = vld [vmem:[%s250 + $0xb0] sm:$0xff]
                  %281 = vst [vmem:[%s251 + $0x70] sm:$0xff] %v280
                  %v282 = vld [vmem:[%s250 + $0xb8] sm:$0xff]
                  %283 = vst [vmem:[%s251 + $0x78] sm:$0xff] %v282
                  %v284 = vld [vmem:[%s250 + $0x100] sm:$0xff]
                  %285 = vst [vmem:[%s251 + $0x80] sm:$0xff] %v284
                  %v286 = vld [vmem:[%s250 + $0x108] sm:$0xff]
                  %287 = vst [vmem:[%s251 + $0x88] sm:$0xff] %v286
                  %v288 = vld [vmem:[%s250 + $0x110] sm:$0xff]
                  %289 = vst [vmem:[%s251 + $0x90] sm:$0xff] %v288
                  %v290 = vld [vmem:[%s250 + $0x118] sm:$0xff]
                  %291 = vst [vmem:[%s251 + $0x98] sm:$0xff] %v290
                  %v292 = vld [vmem:[%s250 + $0x120] sm:$0xff]
                  %293 = vst [vmem:[%s251 + $0xa0] sm:$0xff] %v292
                  %v294 = vld [vmem:[%s250 + $0x128] sm:$0xff]
                  %295 = vst [vmem:[%s251 + $0xa8] sm:$0xff] %v294
                  %v296 = vld [vmem:[%s250 + $0x130] sm:$0xff]
                  %297 = vst [vmem:[%s251 + $0xb0] sm:$0xff] %v296
                  %v298 = vld [vmem:[%s250 + $0x138] sm:$0xff]
                  %299 = vst [vmem:[%s251 + $0xb8] sm:$0xff] %v298
                  %v300 = vld [vmem:[%s250 + $0x180] sm:$0xff]
                  %301 = vst [vmem:[%s251 + $0xc0] sm:$0xff] %v300
                  %v302 = vld [vmem:[%s250 + $0x188] sm:$0xff]
                  %303 = vst [vmem:[%s251 + $0xc8] sm:$0xff] %v302
                  %v304 = vld [vmem:[%s250 + $0x190] sm:$0xff]
                  %305 = vst [vmem:[%s251 + $0xd0] sm:$0xff] %v304
                  %v306 = vld [vmem:[%s250 + $0x198] sm:$0xff]
                  %307 = vst [vmem:[%s251 + $0xd8] sm:$0xff] %v306
                  %v308 = vld [vmem:[%s250 + $0x1a0] sm:$0xff]
                  %309 = vst [vmem:[%s251 + $0xe0] sm:$0xff] %v308
                  %v310 = vld [vmem:[%s250 + $0x1a8] sm:$0xff]
                  %311 = vst [vmem:[%s251 + $0xe8] sm:$0xff] %v310
                  %v312 = vld [vmem:[%s250 + $0x1b0] sm:$0xff]
                  %313 = vst [vmem:[%s251 + $0xf0] sm:$0xff] %v312
                  %v314 = vld [vmem:[%s250 + $0x1b8] sm:$0xff]
                  %315 = vst [vmem:[%s251 + $0xf8] sm:$0xff] %v314
                $region60: #{transition_layer.1} parent=54 // loop_footer
                  %s249 = sadd.s32 1, %s245
                $region61: #{transition_layer.1} parent=54 // loop_footer_branch
                  %244 = sbr.rel target = $region57
                $region62: #{transition_layer.1} parent=54 // loop_exit
                  _
              $region55: #{transition_layer.1} parent=39 // pred_fallthru
                _
              // Predicated region
              $region63: #{transition_layer.1} parent=39 // pred_check
                _
              $region64: #{transition_layer.1} parent=39 // pred_check_branch
                %317 = sbr.rel target = $region66
              $region65: #{transition_layer.1} parent=39 // pred_region
                _
              $region66: #{transition_layer.1} parent=39 // pred_fallthru
                _
            $region40: #{transition_layer.1} parent=35 // pred_fallthru
              _
            // Predicated region
            $region41: #{transition_layer.1} parent=35 // pred_check
              _
            $region42: #{transition_layer.1} parent=35 // pred_check_branch
              %168 = sbr.rel target = $region44
            $region43: #{transition_layer.1} parent=35 // pred_region
              loop: start=0, step=1, limit=1
              $region45: #{transition_layer.1} parent=43 // loop_pre_header
                _
              $region46: #{transition_layer.1} parent=43 // loop_header
                %s171 = sphi 0, %s175
                %p172 = scmp.ge.s32.totalorder %s171, 1
                %s176 = sphi %s162, %s162
                %s177 = sphi %s159, %s159
              $region47: #{transition_layer.1} parent=43 // loop_header_branch
                %174 = sbr.rel (%p172) target = $region51
              $region48: #{transition_layer.1} parent=43 // loop_body
                %v178 = vld [vmem:[%s176] sm:$0xff]
                %179 = vst [vmem:[%s177] sm:$0xff] %v178
                %v180 = vld [vmem:[%s176 + $0x8] sm:$0xff]
                %181 = vst [vmem:[%s177 + $0x8] sm:$0xff] %v180
                %v182 = vld [vmem:[%s176 + $0x10] sm:$0xff]
                %183 = vst [vmem:[%s177 + $0x10] sm:$0xff] %v182
                %v184 = vld [vmem:[%s176 + $0x18] sm:$0xff]
                %185 = vst [vmem:[%s177 + $0x18] sm:$0xff] %v184
                %v186 = vld [vmem:[%s176 + $0x20] sm:$0xff]
                %187 = vst [vmem:[%s177 + $0x20] sm:$0xff] %v186
                %v188 = vld [vmem:[%s176 + $0x28] sm:$0xff]
                %189 = vst [vmem:[%s177 + $0x28] sm:$0xff] %v188
                %v190 = vld [vmem:[%s176 + $0x30] sm:$0xff]
                %191 = vst [vmem:[%s177 + $0x30] sm:$0xff] %v190
                %v192 = vld [vmem:[%s176 + $0x38] sm:$0xff]
                %193 = vst [vmem:[%s177 + $0x38] sm:$0xff] %v192
                %v194 = vld [vmem:[%s176 + $0x80] sm:$0xff]
                %195 = vst [vmem:[%s177 + $0x40] sm:$0xff] %v194
                %v196 = vld [vmem:[%s176 + $0x88] sm:$0xff]
                %197 = vst [vmem:[%s177 + $0x48] sm:$0xff] %v196
                %v198 = vld [vmem:[%s176 + $0x90] sm:$0xff]
                %199 = vst [vmem:[%s177 + $0x50] sm:$0xff] %v198
                %v200 = vld [vmem:[%s176 + $0x98] sm:$0xff]
                %201 = vst [vmem:[%s177 + $0x58] sm:$0xff] %v200
                %v202 = vld [vmem:[%s176 + $0xa0] sm:$0xff]
                %203 = vst [vmem:[%s177 + $0x60] sm:$0xff] %v202
                %v204 = vld [vmem:[%s176 + $0xa8] sm:$0xff]
                %205 = vst [vmem:[%s177 + $0x68] sm:$0xff] %v204
                %v206 = vld [vmem:[%s176 + $0xb0] sm:$0xff]
                %207 = vst [vmem:[%s177 + $0x70] sm:$0xff] %v206
                %v208 = vld [vmem:[%s176 + $0xb8] sm:$0xff]
                %209 = vst [vmem:[%s177 + $0x78] sm:$0xff] %v208
                %v210 = vld [vmem:[%s176 + $0x100] sm:$0xff]
                %211 = vst [vmem:[%s177 + $0x80] sm:$0xff] %v210
                %v212 = vld [vmem:[%s176 + $0x108] sm:$0xff]
                %213 = vst [vmem:[%s177 + $0x88] sm:$0xff] %v212
                %v214 = vld [vmem:[%s176 + $0x110] sm:$0xff]
                %215 = vst [vmem:[%s177 + $0x90] sm:$0xff] %v214
                %v216 = vld [vmem:[%s176 + $0x118] sm:$0xff]
                %217 = vst [vmem:[%s177 + $0x98] sm:$0xff] %v216
                %v218 = vld [vmem:[%s176 + $0x120] sm:$0xff]
                %219 = vst [vmem:[%s177 + $0xa0] sm:$0xff] %v218
                %v220 = vld [vmem:[%s176 + $0x128] sm:$0xff]
                %221 = vst [vmem:[%s177 + $0xa8] sm:$0xff] %v220
                %v222 = vld [vmem:[%s176 + $0x130] sm:$0xff]
                %223 = vst [vmem:[%s177 + $0xb0] sm:$0xff] %v222
                %v224 = vld [vmem:[%s176 + $0x138] sm:$0xff]
                %225 = vst [vmem:[%s177 + $0xb8] sm:$0xff] %v224
                %v226 = vld [vmem:[%s176 + $0x180] sm:$0xff]
                %227 = vst [vmem:[%s177 + $0xc0] sm:$0xff] %v226
                %v228 = vld [vmem:[%s176 + $0x188] sm:$0xff]
                %229 = vst [vmem:[%s177 + $0xc8] sm:$0xff] %v228
                %v230 = vld [vmem:[%s176 + $0x190] sm:$0xff]
                %231 = vst [vmem:[%s177 + $0xd0] sm:$0xff] %v230
                %v232 = vld [vmem:[%s176 + $0x198] sm:$0xff]
                %233 = vst [vmem:[%s177 + $0xd8] sm:$0xff] %v232
                %v234 = vld [vmem:[%s176 + $0x1a0] sm:$0xff]
                %235 = vst [vmem:[%s177 + $0xe0] sm:$0xff] %v234
                %v236 = vld [vmem:[%s176 + $0x1a8] sm:$0xff]
                %237 = vst [vmem:[%s177 + $0xe8] sm:$0xff] %v236
                %v238 = vld [vmem:[%s176 + $0x1b0] sm:$0xff]
                %239 = vst [vmem:[%s177 + $0xf0] sm:$0xff] %v238
                %v240 = vld [vmem:[%s176 + $0x1b8] sm:$0xff]
                %241 = vst [vmem:[%s177 + $0xf8] sm:$0xff] %v240
              $region49: #{transition_layer.1} parent=43 // loop_footer
                %s175 = sadd.s32 1, %s171
              $region50: #{transition_layer.1} parent=43 // loop_footer_branch
                %170 = sbr.rel target = $region46
              $region51: #{transition_layer.1} parent=43 // loop_exit
                _
            $region44: #{transition_layer.1} parent=35 // pred_fallthru
              _
          $region36: #{transition_layer.1} parent=31 // pred_fallthru
            _
          %318 = vnop
        $region32: #{transition_layer.1} parent=27 // pred_fallthru
          _
      $region28: #{transition_layer.1} parent=5 // pred_fallthru
        _
      %p319 = scmp.le.s32.totalorder 1, %s10
      %p320 = scmp.lt.s32.totalorder %s10, 3
      %p321 = pnand %p319, %p320
      %p322 = pneg %p321
      // Predicated region
      $region67: #{transition_layer.1} parent=5 // pred_check
        _
      $region68: #{transition_layer.1} parent=5 // pred_check_branch
        %324 = sbr.rel (%p321) target = $region70
      $region69: #{transition_layer.1} parent=5 // pred_region
        %s325 = ssub.s32 %s10, 1
        %s326 = sand.u32 %s23, 1
        %s327 = sand.u32 %s23, 1
        %s328 = smul.addr %s327, 256
        %s329 = scalar_lea.vmem [#allocation2], %s328
        // Predicated region
        $region71: #{transition_layer.1} parent=69 // pred_check
          %p330 = pneg %p36
        $region72: #{transition_layer.1} parent=69 // pred_check_branch
          %332 = sbr.rel (%p330) target = $region74
        $region73: #{transition_layer.1} parent=69 // pred_region
          _
        $region74: #{transition_layer.1} parent=69 // pred_fallthru
          _
        %s333 = sand.u32 %s23, 1
        %s334 = sand.u32 %s23, 1
        %s335 = smul.addr %s334, 256
        %s336 = scalar_lea.vmem [#allocation2], %s335
        %p337 = pneg %p36
        %p338 = pneg %p33
        %p339 = pneg %p57
        %p340 = pneg %p54
        %p341 = pneg %p78
        %p342 = pneg %p75
        %p343 = pneg %p99
        %p344 = pneg %p96
        %p345 = pneg %p125
        %p346 = pneg %p122
        %s347 = smul.u32 8, %s15
        %p348 = scmp.lt.s32.totalorder %s347, 15
        %s349 = scalar_select %p348, %s347, 15
        %s350 = smul.addr %s349, 8
        %s351 = scalar_lea.vmem %s4, %s350
        %s352 = smul.u32 8, %s15
        %s353 = smul.u32 8, %s15
        %p354 = scmp.lt.s32.totalorder %s353, 15
        %s355 = scalar_select %p354, %s353, 15
        %s356 = smul.addr %s355, 8
        %s357 = scalar_lea.vmem %s4, %s356
        %s358 = smul.u32 8, %s15
        %v359 = vld [vmem:[%s1] sm:$0x1]
        %v360 = vld [vmem:[%s2] sm:$0x1]
        %v361 = vld [vmem:[%s329] sm:$0xff]
        %v362 = vld [vmem:[%s329 + $0x8] sm:$0xff]
        %v363 = vld [vmem:[%s329 + $0x10] sm:$0xff]
        %v364 = vld [vmem:[%s329 + $0x18] sm:$0xff]
        %v365 = vld [vmem:[%s329 + $0x20] sm:$0xff]
        %v366 = vld [vmem:[%s329 + $0x28] sm:$0xff]
        %v367 = vld [vmem:[%s329 + $0x30] sm:$0xff]
        %v368 = vld [vmem:[%s329 + $0x38] sm:$0xff]
        %v370 = vlaneseq
        %v371 = vshrl.u32 %v370, 7
        %v372 = vsub.s32 0, %v371
        %v373 = vrot.slane %v359, %v372
        %v375 = vmul.f32 %v361, %v373
        %v376 = vmul.f32 %v362, %v373
        %v377 = vmul.f32 %v363, %v373
        %v378 = vmul.f32 %v364, %v373
        %v379 = vmul.f32 %v365, %v373
        %v380 = vmul.f32 %v366, %v373
        %v381 = vmul.f32 %v367, %v373
        %v382 = vmul.f32 %v368, %v373
        %v384 = vlaneseq
        %v385 = vshrl.u32 %v384, 7
        %v386 = vsub.s32 0, %v385
        %v387 = vrot.slane %v360, %v386
        %v389 = vadd.f32 %v375, %v387
        %v390 = vadd.f32 %v376, %v387
        %v391 = vadd.f32 %v377, %v387
        %v392 = vadd.f32 %v378, %v387
        %v393 = vadd.f32 %v379, %v387
        %v394 = vadd.f32 %v380, %v387
        %v395 = vadd.f32 %v381, %v387
        %v396 = vadd.f32 %v382, %v387
        %v397 = vmax.f32 %v389, 0.0
        %v398 = vmax.f32 %v390, 0.0
        %v399 = vmax.f32 %v391, 0.0
        %v400 = vmax.f32 %v392, 0.0
        %v401 = vmax.f32 %v393, 0.0
        %v402 = vmax.f32 %v394, 0.0
        %v403 = vmax.f32 %v395, 0.0
        %v404 = vmax.f32 %v396, 0.0
        %s405 = scalar_lea.vmem %s329, 64 [#allocation2]
        %v406 = vld [vmem:[%s405] sm:$0xff]
        %v407 = vld [vmem:[%s405 + $0x8] sm:$0xff]
        %v408 = vld [vmem:[%s405 + $0x10] sm:$0xff]
        %v409 = vld [vmem:[%s405 + $0x18] sm:$0xff]
        %v410 = vld [vmem:[%s405 + $0x20] sm:$0xff]
        %v411 = vld [vmem:[%s405 + $0x28] sm:$0xff]
        %v412 = vld [vmem:[%s405 + $0x30] sm:$0xff]
        %v413 = vld [vmem:[%s405 + $0x38] sm:$0xff]
        %v414 = vmul.f32 %v406, %v373
        %v415 = vmul.f32 %v407, %v373
        %v416 = vmul.f32 %v408, %v373
        %v417 = vmul.f32 %v409, %v373
        %v418 = vmul.f32 %v410, %v373
        %v419 = vmul.f32 %v411, %v373
        %v420 = vmul.f32 %v412, %v373
        %v421 = vmul.f32 %v413, %v373
        %v422 = vadd.f32 %v414, %v387
        %v423 = vadd.f32 %v415, %v387
        %v424 = vadd.f32 %v416, %v387
        %v425 = vadd.f32 %v417, %v387
        %v426 = vadd.f32 %v418, %v387
        %v427 = vadd.f32 %v419, %v387
        %v428 = vadd.f32 %v420, %v387
        %v429 = vadd.f32 %v421, %v387
        %v430 = vmax.f32 %v422, 0.0
        %v431 = vmax.f32 %v423, 0.0
        %v432 = vmax.f32 %v424, 0.0
        %v433 = vmax.f32 %v425, 0.0
        %v434 = vmax.f32 %v426, 0.0
        %v435 = vmax.f32 %v427, 0.0
        %v436 = vmax.f32 %v428, 0.0
        %v437 = vmax.f32 %v429, 0.0
        %v438 = vadd.f32 %v397, %v430
        %v439 = vadd.f32 %v398, %v431
        %v440 = vadd.f32 %v399, %v432
        %v441 = vadd.f32 %v400, %v433
        %v442 = vadd.f32 %v401, %v434
        %v443 = vadd.f32 %v402, %v435
        %v444 = vadd.f32 %v403, %v436
        %v445 = vadd.f32 %v404, %v437
        %s446 = scalar_lea.vmem %s329, 128 [#allocation2]
        %v447 = vld [vmem:[%s446] sm:$0xff]
        %v448 = vld [vmem:[%s446 + $0x8] sm:$0xff]
        %v449 = vld [vmem:[%s446 + $0x10] sm:$0xff]
        %v450 = vld [vmem:[%s446 + $0x18] sm:$0xff]
        %v451 = vld [vmem:[%s446 + $0x20] sm:$0xff]
        %v452 = vld [vmem:[%s446 + $0x28] sm:$0xff]
        %v453 = vld [vmem:[%s446 + $0x30] sm:$0xff]
        %v454 = vld [vmem:[%s446 + $0x38] sm:$0xff]
        %v455 = vmul.f32 %v447, %v373
        %v456 = vmul.f32 %v448, %v373
        %v457 = vmul.f32 %v449, %v373
        %v458 = vmul.f32 %v450, %v373
        %v459 = vmul.f32 %v451, %v373
        %v460 = vmul.f32 %v452, %v373
        %v461 = vmul.f32 %v453, %v373
        %v462 = vmul.f32 %v454, %v373
        %v463 = vadd.f32 %v455, %v387
        %v464 = vadd.f32 %v456, %v387
        %v465 = vadd.f32 %v457, %v387
        %v466 = vadd.f32 %v458, %v387
        %v467 = vadd.f32 %v459, %v387
        %v468 = vadd.f32 %v460, %v387
        %v469 = vadd.f32 %v461, %v387
        %v470 = vadd.f32 %v462, %v387
        %v471 = vmax.f32 %v463, 0.0
        %v472 = vmax.f32 %v464, 0.0
        %v473 = vmax.f32 %v465, 0.0
        %v474 = vmax.f32 %v466, 0.0
        %v475 = vmax.f32 %v467, 0.0
        %v476 = vmax.f32 %v468, 0.0
        %v477 = vmax.f32 %v469, 0.0
        %v478 = vmax.f32 %v470, 0.0
        %v479 = vadd.f32 %v438, %v471
        %v480 = vadd.f32 %v439, %v472
        %v481 = vadd.f32 %v440, %v473
        %v482 = vadd.f32 %v441, %v474
        %v483 = vadd.f32 %v442, %v475
        %v484 = vadd.f32 %v443, %v476
        %v485 = vadd.f32 %v444, %v477
        %v486 = vadd.f32 %v445, %v478
        %s487 = scalar_lea.vmem %s329, 192 [#allocation2]
        %v488 = vld [vmem:[%s487] sm:$0xff]
        %v489 = vld [vmem:[%s487 + $0x8] sm:$0xff]
        %v490 = vld [vmem:[%s487 + $0x10] sm:$0xff]
        %v491 = vld [vmem:[%s487 + $0x18] sm:$0xff]
        %v492 = vld [vmem:[%s487 + $0x20] sm:$0xff]
        %v493 = vld [vmem:[%s487 + $0x28] sm:$0xff]
        %v494 = vld [vmem:[%s487 + $0x30] sm:$0xff]
        %v495 = vld [vmem:[%s487 + $0x38] sm:$0xff]
        %v496 = vmul.f32 %v488, %v373
        %v497 = vmul.f32 %v489, %v373
        %v498 = vmul.f32 %v490, %v373
        %v499 = vmul.f32 %v491, %v373
        %v500 = vmul.f32 %v492, %v373
        %v501 = vmul.f32 %v493, %v373
        %v502 = vmul.f32 %v494, %v373
        %v503 = vmul.f32 %v495, %v373
        %v504 = vadd.f32 %v496, %v387
        %v505 = vadd.f32 %v497, %v387
        %v506 = vadd.f32 %v498, %v387
        %v507 = vadd.f32 %v499, %v387
        %v508 = vadd.f32 %v500, %v387
        %v509 = vadd.f32 %v501, %v387
        %v510 = vadd.f32 %v502, %v387
        %v511 = vadd.f32 %v503, %v387
        %v512 = vmax.f32 %v504, 0.0
        %v513 = vmax.f32 %v505, 0.0
        %v514 = vmax.f32 %v506, 0.0
        %v515 = vmax.f32 %v507, 0.0
        %v516 = vmax.f32 %v508, 0.0
        %v517 = vmax.f32 %v509, 0.0
        %v518 = vmax.f32 %v510, 0.0
        %v519 = vmax.f32 %v511, 0.0
        %v520 = vadd.f32 %v479, %v512
        %v521 = vadd.f32 %v480, %v513
        %v522 = vadd.f32 %v481, %v514
        %v523 = vadd.f32 %v482, %v515
        %v524 = vadd.f32 %v483, %v516
        %v525 = vadd.f32 %v484, %v517
        %v526 = vadd.f32 %v485, %v518
        %v527 = vadd.f32 %v486, %v519
        %v528 = vld [vmem:[%s3] sm:$0xff]
        %v529 = vld [vmem:[%s3 + $0x8] sm:$0xff]
        %vm530 = vcmask 130048
        %v532 = vsel %vm530, %v520, 0
        %v535 = vsel %vm530, %v521, 0
        %v538 = vsel %vm530, %v522, 0
        %v541 = vsel %vm530, %v523, 0
        %v544 = vsel %vm530, %v524, 0
        %v547 = vsel %vm530, %v525, 0
        %v550 = vsel %vm530, %v526, 0
        %v553 = vsel %vm530, %v527, 0
        %555 = vmatprep.subr.mxu0 0.0
        %556 = vmatpush1.msra.mxu0 %v528
        %557 = vmatprep.subr.mxu0 0.0
        %558 = vmatpush1.msra.mxu0 %v529
        %559 = vmatprep.subr.mxu0 0.0
        %560 = vmatpush1.msra.mxu0 0.0
        %561 = vmatprep.subr.mxu0 0.0
        %562 = vmatpush1.msra.mxu0 0.0
        %563 = vmatprep.subr.mxu0 0.0
        %564 = vmatpush1.msra.mxu0 0.0
        %565 = vmatprep.subr.mxu0 0.0
        %566 = vmatpush1.msra.mxu0 0.0
        %567 = vmatprep.subr.mxu0 0.0
        %568 = vmatpush1.msra.mxu0 0.0
        %569 = vmatprep.subr.mxu0 0.0
        %570 = vmatpush1.msra.mxu0 0.0
        %571 = vmatprep.subr.mxu0 0.0
        %572 = vmatpush1.msra.mxu0 0.0
        %573 = vmatprep.subr.mxu0 0.0
        %574 = vmatpush1.msra.mxu0 0.0
        %575 = vmatprep.subr.mxu0 0.0
        %576 = vmatpush1.msra.mxu0 0.0
        %577 = vmatprep.subr.mxu0 0.0
        %578 = vmatpush1.msra.mxu0 0.0
        %579 = vmatprep.subr.mxu0 0.0
        %580 = vmatpush1.msra.mxu0 0.0
        %581 = vmatprep.subr.mxu0 0.0
        %582 = vmatpush1.msra.mxu0 0.0
        %583 = vmatprep.subr.mxu0 0.0
        %584 = vmatpush1.msra.mxu0 0.0
        %585 = vmatprep.subr.mxu0 0.0
        %586 = vmatpush1.msra.mxu0 0.0
        %587 = vmatprep.subr.mxu0 0.0
        %588 = vmatpush1.msra.mxu0 0.0
        %589 = vmatprep.subr.mxu0 0.0
        %590 = vmatpush1.msra.mxu0 0.0
        %591 = vmatprep.subr.mxu0 0.0
        %592 = vmatpush1.msra.mxu0 0.0
        %593 = vmatprep.subr.mxu0 0.0
        %594 = vmatpush1.msra.mxu0 0.0
        %595 = vmatprep.subr.mxu0 0.0
        %596 = vmatpush1.msra.mxu0 0.0
        %597 = vmatprep.subr.mxu0 0.0
        %598 = vmatpush1.msra.mxu0 0.0
        %599 = vmatprep.subr.mxu0 0.0
        %600 = vmatpush1.msra.mxu0 0.0
        %601 = vmatprep.subr.mxu0 0.0
        %602 = vmatpush1.msra.mxu0 0.0
        %603 = vmatprep.subr.mxu0 0.0
        %604 = vmatpush1.msra.mxu0 0.0
        %605 = vmatprep.subr.mxu0 0.0
        %606 = vmatpush1.msra.mxu0 0.0
        %607 = vmatprep.subr.mxu0 0.0
        %608 = vmatpush1.msra.mxu0 0.0
        %609 = vmatprep.subr.mxu0 0.0
        %610 = vmatpush1.msra.mxu0 0.0
        %611 = vmatprep.subr.mxu0 0.0
        %612 = vmatpush1.msra.mxu0 0.0
        %613 = vmatprep.subr.mxu0 0.0
        %614 = vmatpush1.msra.mxu0 0.0
        %615 = vmatprep.subr.mxu0 0.0
        %616 = vmatpush1.msra.mxu0 0.0
        %617 = vmatprep.subr.mxu0 0.0
        %618 = vmatpush1.msra.mxu0 0.0
        %619 = vmatprep.mubr.f32.mxu0 0.0
        %620 = vmatmul.mubr.f32.gmra.mrb[0].mxu0 %v532
        %v621 = vpop.f32.mrb[0].mxu0
        %v622 = vadd.f32 0.0, %v621
        %v623 = vpop.f32.mrb[0].mxu0
        %624 = vmatprep.mubr.f32.mxu0 0.0
        %625 = vmatmul.mubr.f32.gmra.mrb[0].mxu0 %v535
        %v626 = vpop.f32.mrb[0].mxu0
        %v627 = vadd.f32 0.0, %v626
        %v628 = vpop.f32.mrb[0].mxu0
        %629 = vmatprep.mubr.f32.mxu0 0.0
        %630 = vmatmul.mubr.f32.gmra.mrb[0].mxu0 %v538
        %v631 = vpop.f32.mrb[0].mxu0
        %v632 = vadd.f32 0.0, %v631
        %v633 = vpop.f32.mrb[0].mxu0
        %634 = vmatprep.mubr.f32.mxu0 0.0
        %635 = vmatmul.mubr.f32.gmra.mrb[0].mxu0 %v541
        %v636 = vpop.f32.mrb[0].mxu0
        %v637 = vadd.f32 0.0, %v636
        %v638 = vpop.f32.mrb[0].mxu0
        %639 = vmatprep.mubr.f32.mxu0 0.0
        %640 = vmatmul.mubr.f32.gmra.mrb[0].mxu0 %v544
        %v641 = vpop.f32.mrb[0].mxu0
        %v642 = vadd.f32 0.0, %v641
        %v643 = vpop.f32.mrb[0].mxu0
        %644 = vmatprep.mubr.f32.mxu0 0.0
        %645 = vmatmul.mubr.f32.gmra.mrb[0].mxu0 %v547
        %v646 = vpop.f32.mrb[0].mxu0
        %v647 = vadd.f32 0.0, %v646
        %v648 = vpop.f32.mrb[0].mxu0
        %649 = vmatprep.mubr.f32.mxu0 0.0
        %650 = vmatmul.mubr.f32.gmra.mrb[0].mxu0 %v550
        %v651 = vpop.f32.mrb[0].mxu0
        %v652 = vadd.f32 0.0, %v651
        %v653 = vpop.f32.mrb[0].mxu0
        %654 = vmatprep.mubr.f32.mxu0 0.0
        %655 = vmatmul.mubr.f32.gmra.mrb[0].mxu0 %v553
        %v656 = vpop.f32.mrb[0].mxu0
        %v657 = vadd.f32 0.0, %v656
        %v658 = vpop.f32.mrb[0].mxu0
        %659 = vdwg.mxu0
        %vm660 = vcmask 64512
        %661 = vst.msk [vmem:[%s357] sm:$0xff] %vm660, %v622
        %662 = vst.msk [vmem:[%s357 + $0x8] sm:$0xff] %vm660, %v627
        %663 = vst.msk [vmem:[%s357 + $0x10] sm:$0xff] %vm660, %v632
        %664 = vst.msk [vmem:[%s357 + $0x18] sm:$0xff] %vm660, %v637
        %665 = vst.msk [vmem:[%s357 + $0x20] sm:$0xff] %vm660, %v642
        %666 = vst.msk [vmem:[%s357 + $0x28] sm:$0xff] %vm660, %v647
        %667 = vst.msk [vmem:[%s357 + $0x30] sm:$0xff] %vm660, %v652
        %668 = vst.msk [vmem:[%s357 + $0x38] sm:$0xff] %vm660, %v657
        %s669 = smul.u32 8, %s15
        %p670 = scmp.lt.s32.totalorder %s669, 15
        %s671 = scalar_select %p670, %s669, 15
        %s672 = smul.addr %s671, 8
        %s673 = scalar_lea.vmem %s4, %s672
        // Predicated region
        $region75: #{transition_layer.1} parent=69 // pred_check
          %p674 = pneg %p122
        $region76: #{transition_layer.1} parent=69 // pred_check_branch
          %676 = sbr.rel (%p674) target = $region78
        $region77: #{transition_layer.1} parent=69 // pred_region
          %s677 = smul.u32 8, %s15
        $region78: #{transition_layer.1} parent=69 // pred_fallthru
          _
      $region70: #{transition_layer.1} parent=5 // pred_fallthru
        _
      %p678 = scmp.le.s32.totalorder 2, %s10
      // Predicated region
      $region79: #{transition_layer.1} parent=5 // pred_check
        %p679 = pneg %p678
      $region80: #{transition_layer.1} parent=5 // pred_check_branch
        %681 = sbr.rel (%p679) target = $region82
      $region81: #{transition_layer.1} parent=5 // pred_region
        %s682 = ssub.s32 %s10, 2
        // Predicated region
        $region83: #{transition_layer.1} parent=81 // pred_check
          %p683 = pneg %p128
        $region84: #{transition_layer.1} parent=81 // pred_check_branch
          %685 = sbr.rel (%p683) target = $region86
        $region85: #{transition_layer.1} parent=81 // pred_region
          %s686 = smul.u32 8, %s16
          %p687 = scmp.lt.s32.totalorder %s686, 15
          %s688 = scalar_select %p687, %s686, 15
          %s689 = smul.addr %s688, 8
          %s690 = scalar_lea.vmem %s4, %s689
        $region86: #{transition_layer.1} parent=81 // pred_fallthru
          _
      $region82: #{transition_layer.1} parent=5 // pred_fallthru
        _
    $region6: #{transition_layer.1} parent=1 // loop_footer
      %s14 = sadd.s32 1, %s10
    $region7: #{transition_layer.1} parent=1 // loop_footer_branch
      %9 = sbr.rel target = $region3
    $region8: #{transition_layer.1} parent=1 // loop_exit
      _

</llo_original>
